<compile_context>
chip_gen: v7x
topology: tpu7x:2x2x1
jax: 0.10.0
libtpu: 0.0.40
codegen_flags: <defaults>
</compile_context>

<pallas_src>
import functools

import jax
import jax.numpy as jnp
from jax.experimental import pallas as pl
from jax.experimental.pallas import tpu as pltpu


def _round_up(x: int, m: int) -> int:
    return ((x + m - 1) // m) * m


# Below this many FLOPs the pallas_call is pure launch/step overhead.
_SMALL_FLOP_THRESHOLD = 1 << 22  # ~4 MFLOP

# Flipped to False (once, process-wide) if pipeline_mode=pl.Buffered(1) is
# rejected by the installed JAX/Mosaic version.
_WEIGHT_SINGLE_BUFFER = True

_TPU_CFG = None


def _tpu_config():
    """(num_tensorcores, usable_vmem_cap_bytes) for the local TPU generation."""
    global _TPU_CFG
    if _TPU_CFG is not None:
        return _TPU_CFG
    kind = ""
    try:
        kind = jax.devices()[0].device_kind.lower()
    except Exception:
        pass
    is_v7 = "7" in kind                      # "tpu7x" / "tpu v7..." ; v2-v6 names have no '7'
    num_tc = 2 if is_v7 else 1
    physical_vmem = (64 if is_v7 else 128) * 1024 * 1024
    try:
        info = pltpu.get_tpu_info()
        cap = getattr(info, "vmem_capacity_bytes", None)
        if cap:
            physical_vmem = int(cap)
    except Exception:
        pass
    vmem_cap = max(32 * 1024 * 1024, int(physical_vmem * 0.8))
    _TPU_CFG = (num_tc, vmem_cap)
    return _TPU_CFG


def _linear_kernel(x_ref, wt_ref, b_ref, o_ref):
    # x_ref: (TB, Dp) bf16   wt_ref: (Dp, Cp) bf16   b_ref: (1, Cp) f32
    # o_ref: (TB, Cp) out dtype.  f32 accumulation on the MXU.
    acc = jnp.dot(x_ref[...], wt_ref[...], preferred_element_type=jnp.float32)
    o_ref[...] = (acc + b_ref[...]).astype(o_ref.dtype)


@functools.partial(
    jax.jit,
    static_argnames=("tile_b", "d_pad", "c_pad", "b_pad", "single_buffer",
                     "compute_dtype", "vmem_limit"))
def _forward_impl(x, weight, bias, *, tile_b, d_pad, c_pad, b_pad,
                  single_buffer, compute_dtype, vmem_limit):
    B, D = x.shape
    C, _ = weight.shape
    out_dtype = x.dtype
    cmp_itm = jnp.dtype(compute_dtype).itemsize
    out_itm = jnp.dtype(out_dtype).itemsize

    # ---- layout plumbing (one-time XLA ops outside the kernel) ------------
    # Explicit casts: weights are cast to the compute dtype (bf16) here; the
    # accumulate stays f32 inside the kernel.
    w_t = jnp.zeros((d_pad, c_pad), dtype=compute_dtype).at[:D, :C].set(
        weight.T.astype(compute_dtype))
    x_p = jnp.zeros((b_pad, d_pad), dtype=compute_dtype).at[:B, :D].set(
        x.astype(compute_dtype))
    b2d = jnp.zeros((1, c_pad), dtype=jnp.float32).at[0, :C].set(
        bias.astype(jnp.float32))

    grid = (b_pad // tile_b,)

    if single_buffer:
        w_spec = pl.BlockSpec((d_pad, c_pad), lambda i: (0, 0),
                              pipeline_mode=pl.Buffered(1))
        b_spec = pl.BlockSpec((1, c_pad), lambda i: (0, 0),
                              pipeline_mode=pl.Buffered(1))
    else:
        w_spec = pl.BlockSpec((d_pad, c_pad), lambda i: (0, 0))
        b_spec = pl.BlockSpec((1, c_pad), lambda i: (0, 0))

    cost = pl.CostEstimate(
        flops=2 * b_pad * d_pad * c_pad,
        transcendentals=0,
        bytes_accessed=(b_pad * d_pad * cmp_itm + d_pad * c_pad * cmp_itm
                        + c_pad * 4 + b_pad * c_pad * out_itm),
    )

    out = pl.pallas_call(
        _linear_kernel,
        out_shape=jax.ShapeDtypeStruct((b_pad, c_pad), out_dtype),
        grid_spec=pl.GridSpec(
            grid=grid,
            in_specs=[
                pl.BlockSpec((tile_b, d_pad), lambda i: (i, 0)),  # x batch tile
                w_spec,                                           # W.T, resident
                b_spec,                                           # bias, resident
            ],
            out_specs=pl.BlockSpec((tile_b, c_pad), lambda i: (i, 0)),
        ),
        compiler_params=pltpu.CompilerParams(
            dimension_semantics=("parallel",),
            vmem_limit_bytes=vmem_limit,
        ),
        cost_estimate=cost,
    )(x_p, w_t, b2d)

    # Drop batch / class padding.
    return out[:B, :C]


def _static_config(B, D, C, compute_dtype, out_itemsize, single_buffer):
    """All Python-int tiling decisions (outside jit)."""
    num_tc, vmem_cap = _tpu_config()
    cmp_itm = jnp.dtype(compute_dtype).itemsize

    d_pad = _round_up(max(D, 1), 128)     # lane-dense x loads / full MXU K passes
    c_pad = _round_up(max(C, 1), 128)     # lane-dense (unmasked) output stores
    B8 = _round_up(max(B, 1), 8)          # f32/bf16 sublane multiple

    # Tile choice: single-TC chips take the whole batch as one tile (up to 1024
    # rows); 2-TC chips expose >= 2 steps per core so the x DMA pipelines.
    if num_tc >= 2:
        desired = min(512, max(8, _round_up(-(-B8 // (2 * num_tc)), 8)))
    else:
        desired = min(1024, B8)

    # VMEM budget: double-buffered x/out tiles + resident (single- or double-
    # buffered) W.T and bias.
    w_bufs = 1 if single_buffer else 2
    weight_bytes = w_bufs * (d_pad * c_pad * cmp_itm + c_pad * 4)
    per_row = 2 * (d_pad * cmp_itm + c_pad * out_itemsize)
    budget = int(vmem_cap * 0.7) - weight_bytes
    max_rows = max(8, (budget // per_row) // 8 * 8) if budget > 8 * per_row else 8
    tile_b = max(8, min(desired, max_rows))

    b_pad = _round_up(B8, tile_b)

    vmem_bytes = (2 * tile_b * d_pad * cmp_itm
                  + 2 * tile_b * c_pad * out_itemsize
                  + weight_bytes)
    vmem_limit = min(max(int(vmem_bytes * 2) + (2 << 20), 32 * 1024 * 1024),
                     vmem_cap)
    return tile_b, d_pad, c_pad, b_pad, vmem_limit


def logistic_regression_forward(x, weight, bias, *, force_pallas=False,
                                compute_dtype=jnp.bfloat16):
    """Forward pass of LogisticRegressionModel (nn.Linear semantics)."""
    global _WEIGHT_SINGLE_BUFFER
    B, D = x.shape
    C, D2 = weight.shape
    assert D == D2 and bias.shape == (C,)

    # Tiny probe heads: launching a Pallas kernel is pure overhead.
    if not force_pallas and (2 * B * D * C) < _SMALL_FLOP_THRESHOLD:
        return (x @ weight.T + bias).astype(x.dtype)

    out_itm = jnp.dtype(x.dtype).itemsize

    def run(single_buffer):
        tile_b, d_pad, c_pad, b_pad, vmem_limit = _static_config(
            B, D, C, compute_dtype, out_itm, single_buffer)
        return _forward_impl(
            x, weight, bias,
            tile_b=tile_b, d_pad=d_pad, c_pad=c_pad, b_pad=b_pad,
            single_buffer=single_buffer, compute_dtype=compute_dtype,
            vmem_limit=vmem_limit)

    try:
        return run(_WEIGHT_SINGLE_BUFFER)
    except Exception:
        if not _WEIGHT_SINGLE_BUFFER:
            raise
        # pipeline_mode=pl.Buffered(1) not supported by this JAX build; fall
        # back to default double-buffered weight/bias specs (correctness same).
        _WEIGHT_SINGLE_BUFFER = False
        return run(False)


if __name__ == "__main__":
    key = jax.random.PRNGKey(0)
    ks = jax.random.split(key, 6)

    def make_case(kx, kw, kb, B, D, C):
        x = jax.random.normal(kx, (B, D), dtype=jnp.float32)
        bound = float(D) ** -0.5
        w = jax.random.uniform(kw, (C, D), jnp.float32, -bound, bound)
        b = jax.random.uniform(kb, (C,), jnp.float32, -bound, bound)
        return x, w, b

    def ref_bf16(x, w, b):
        # Reference for the bf16-fed / f32-accumulated MXU path.
        xb = x.astype(jnp.bfloat16).astype(jnp.float32)
        wb = w.astype(jnp.bfloat16).astype(jnp.float32)
        return xb @ wb.T + b

    # --- case 1: toy probe dims -> plain-XLA fallback path -----------------
    x1, w1, b1 = make_case(ks[0], ks[1], ks[2], 8, 32, 16)
    out1 = jax.block_until_ready(logistic_regression_forward(x1, w1, b1))
    assert out1.shape == (8, 16)
    assert jnp.allclose(out1, x1 @ w1.T + b1, atol=1e-5, rtol=1e-5)

    # --- case 2: same toy dims, force the Pallas kernel (D/C/B padding) ----
    out2 = jax.block_until_ready(
        logistic_regression_forward(x1, w1, b1, force_pallas=True))
    assert out2.shape == (8, 16)
    assert jnp.allclose(out2, ref_bf16(x1, w1, b1), atol=2e-2, rtol=2e-2)

    # --- case 3: non-divisible batch + non-128 class count (Pallas path) ---
    x3, w3, b3 = make_case(ks[3], ks[4], ks[5], 200, 512, 100)
    out3 = jax.block_until_ready(logistic_regression_forward(x3, w3, b3))
    assert out3.shape == (200, 100)
    assert jnp.allclose(out3, ref_bf16(x3, w3, b3), atol=2e-2, rtol=2e-2)
    assert jnp.allclose(out3, x3 @ w3.T + b3, atol=6e-2, rtol=6e-2)

    print("KERNEL_OK")
</pallas_src>

<mosaic_0001>
module attributes {stable_mosaic.version = 11 : i64} {
  func.func @_linear_kernel(%arg0: i32, %arg1: memref<8x128xbf16, #tpu.memory_space<vmem>>, %arg2: memref<128x128xbf16, #tpu.memory_space<vmem>>, %arg3: memref<1x128xf32, #tpu.memory_space<vmem>>, %arg4: memref<8x128xf32, #tpu.memory_space<vmem>>) attributes {dimension_semantics = [#tpu.dimension_semantics<parallel>], iteration_bounds = array<i64: 1>, scalar_prefetch = 0 : i64, scratch_operands = 0 : i64, tpu.core_type = #tpu.core_type<tc>, window_params = [{transform_indices = @transform_0, window_bounds = array<i64: 8, 128>}, {pipeline_mode = #tpu.pipeline_mode<synchronous>, transform_indices = @transform_1, window_bounds = array<i64: 128, 128>}, {pipeline_mode = #tpu.pipeline_mode<synchronous>, transform_indices = @transform_2, window_bounds = array<i64: 1, 128>}, {transform_indices = @transform_3, window_bounds = array<i64: 8, 128>}]} {
    %c0 = arith.constant 0 : index
    %c0_0 = arith.constant 0 : index
    %0 = vector.load %arg1[%c0, %c0_0] : memref<8x128xbf16, #tpu.memory_space<vmem>>, vector<8x128xbf16>
    %c0_1 = arith.constant 0 : index
    %c0_2 = arith.constant 0 : index
    %1 = vector.load %arg2[%c0_1, %c0_2] : memref<128x128xbf16, #tpu.memory_space<vmem>>, vector<128x128xbf16>
    %cst = arith.constant dense<0.000000e+00> : vector<8x128xf32>
    %2 = tpu.matmul %0, %1, %cst {dimension_numbers = #tpu.dot_dimension_numbers<[1], [0], [0], [1], [0, 0, 1, 1], [], []>} : vector<8x128xbf16>, vector<128x128xbf16>, vector<8x128xf32> -> vector<8x128xf32>
    %c0_3 = arith.constant 0 : index
    %c0_4 = arith.constant 0 : index
    %3 = vector.load %arg3[%c0_3, %c0_4] : memref<1x128xf32, #tpu.memory_space<vmem>>, vector<1x128xf32>
    %4 = vector.broadcast %3 : vector<1x128xf32> to vector<8x128xf32>
    %5 = arith.addf %2, %4 : vector<8x128xf32>
    %c0_5 = arith.constant 0 : index
    %c0_6 = arith.constant 0 : index
    %6 = vector.load %arg4[%c0_5, %c0_6] : memref<8x128xf32, #tpu.memory_space<vmem>>, vector<8x128xf32>
    tpu.vector_store %arg4[%c0_5, %c0_6], %5 {strides = array<i32>} : memref<8x128xf32, #tpu.memory_space<vmem>>, vector<8x128xf32>,
    return
  }
  func.func @transform_0(%arg0: i32) -> (i32, i32) {
    %c0_i32 = arith.constant 0 : i32
    %c0_i32_0 = arith.constant 0 : i32
    return %arg0, %c0_i32 : i32, i32
  }
  func.func @transform_1(%arg0: i32) -> (i32, i32) {
    %c0_i32 = arith.constant 0 : i32
    %c0_i32_0 = arith.constant 0 : i32
    %c0_i32_1 = arith.constant 0 : i32
    return %c0_i32, %c0_i32_0 : i32, i32
  }
  func.func @transform_2(%arg0: i32) -> (i32, i32) {
    %c0_i32 = arith.constant 0 : i32
    %c0_i32_0 = arith.constant 0 : i32
    %c0_i32_1 = arith.constant 0 : i32
    return %c0_i32, %c0_i32_0 : i32, i32
  }
  func.func @transform_3(%arg0: i32) -> (i32, i32) {
    %c0_i32 = arith.constant 0 : i32
    %c0_i32_0 = arith.constant 0 : i32
    return %arg0, %c0_i32 : i32, i32
  }
}

module attributes {stable_mosaic.version = 11 : i64} {
  func.func @_linear_kernel(%arg0: i32, %arg1: memref<8x128xbf16, #tpu.memory_space<vmem>>, %arg2: memref<128x128xbf16, #tpu.memory_space<vmem>>, %arg3: memref<1x128xf32, #tpu.memory_space<vmem>>, %arg4: memref<8x128xf32, #tpu.memory_space<vmem>>) attributes {dimension_semantics = [#tpu.dimension_semantics<parallel>], iteration_bounds = array<i64: 1>, scalar_prefetch = 0 : i64, scratch_operands = 0 : i64, tpu.core_type = #tpu.core_type<tc>, window_params = [{transform_indices = @transform_0, window_bounds = array<i64: 8, 128>}, {pipeline_mode = #tpu.pipeline_mode<synchronous>, transform_indices = @transform_1, window_bounds = array<i64: 128, 128>}, {pipeline_mode = #tpu.pipeline_mode<synchronous>, transform_indices = @transform_2, window_bounds = array<i64: 1, 128>}, {transform_indices = @transform_3, window_bounds = array<i64: 8, 128>}]} {
    %c0 = arith.constant 0 : index
    %c0_0 = arith.constant 0 : index
    %0 = vector.load %arg1[%c0, %c0_0] : memref<8x128xbf16, #tpu.memory_space<vmem>>, vector<8x128xbf16>
    %c0_1 = arith.constant 0 : index
    %c0_2 = arith.constant 0 : index
    %1 = vector.load %arg2[%c0_1, %c0_2] : memref<128x128xbf16, #tpu.memory_space<vmem>>, vector<128x128xbf16>
    %cst = arith.constant dense<0.000000e+00> : vector<8x128xf32>
    %2 = tpu.matmul %0, %1, %cst {dimension_numbers = #tpu.dot_dimension_numbers<[1], [0], [0], [1], [0, 0, 1, 1], [], []>} : vector<8x128xbf16>, vector<128x128xbf16>, vector<8x128xf32> -> vector<8x128xf32>
    %c0_3 = arith.constant 0 : index
    %c0_4 = arith.constant 0 : index
    %3 = vector.load %arg3[%c0_3, %c0_4] : memref<1x128xf32, #tpu.memory_space<vmem>>, vector<1x128xf32>
    %4 = vector.broadcast %3 : vector<1x128xf32> to vector<8x128xf32>
    %5 = arith.addf %2, %4 : vector<8x128xf32>
    %c0_5 = arith.constant 0 : index
    %c0_6 = arith.constant 0 : index
    %6 = vector.load %arg4[%c0_5, %c0_6] : memref<8x128xf32, #tpu.memory_space<vmem>>, vector<8x128xf32>
    tpu.vector_store %arg4[%c0_5, %c0_6], %5 {strides = array<i32>} : memref<8x128xf32, #tpu.memory_space<vmem>>, vector<8x128xf32>,
    return
  }
  func.func @transform_0(%arg0: i32) -> (i32, i32) {
    %c0_i32 = arith.constant 0 : i32
    %c0_i32_0 = arith.constant 0 : i32
    return %arg0, %c0_i32 : i32, i32
  }
  func.func @transform_1(%arg0: i32) -> (i32, i32) {
    %c0_i32 = arith.constant 0 : i32
    %c0_i32_0 = arith.constant 0 : i32
    %c0_i32_1 = arith.constant 0 : i32
    return %c0_i32, %c0_i32_0 : i32, i32
  }
  func.func @transform_2(%arg0: i32) -> (i32, i32) {
    %c0_i32 = arith.constant 0 : i32
    %c0_i32_0 = arith.constant 0 : i32
    %c0_i32_1 = arith.constant 0 : i32
    return %c0_i32, %c0_i32_0 : i32, i32
  }
  func.func @transform_3(%arg0: i32) -> (i32, i32) {
    %c0_i32 = arith.constant 0 : i32
    %c0_i32_0 = arith.constant 0 : i32
    return %arg0, %c0_i32 : i32, i32
  }
}

</mosaic_0001>

<llo_original>
// kernel: _forward_impl.1
$region0: #{_forward_impl.1}
  #allocation0 [shape = 'u32[]', space=smem, size = 0x4, offset = 0x4, fixed_abs, tag = 'smem constant byte address 0x4 - core index']
  #allocation1 [shape = 'u32[144,128]{1,0:T(1,128)}', space=vmem, size = 0x12000, scoped, tag = 'internal scratch']
  %s0 = inlined_call_operand.vmem [shape: bf16[8,128], index: 0, kind: input, shape index: {}]
  %s1 = inlined_call_operand.vmem [shape: bf16[128,128], index: 1, kind: input, shape index: {}]
  %s2 = inlined_call_operand.vmem [shape: f32[1,128], index: 2, kind: input, shape index: {}]
  %s3 = inlined_call_operand.hbm [shape: f32[8,128], index: 3, kind: output, shape index: {}]
  %s4 = sld [smem:[#allocation0]]
  $region22: #{_forward_impl.1} parent=0
    _
  %s6 = ssub.s32 1, %s4
  %s7 = scalar_select 0, %s6, %s4
  $region1: #{_forward_impl.1} parent=0
    #allocation2 [shape = 'u8[4096]{0}', space=vmem, size = 0x1000, scoped, tag = 'output window, operand 0, single buffered']
    #allocation3 [shape = 's32[1]{0}', space=sflag, size = 0x4, scoped, tag = 'scoped memory for _forward_impl.1']
    %8 = vsyncpa [#allocation3], 0
    // Predicated region
    $region2: #{_forward_impl.1} parent=1 // pred_check
      _
    $region3: #{_forward_impl.1} parent=1 // pred_check_branch
      %10 = sbr.rel (0) target = $region5
    $region4: #{_forward_impl.1} parent=1 // pred_region
      _
    $region5: #{_forward_impl.1} parent=1 // pred_fallthru
      _
    // Predicated region
    $region6: #{_forward_impl.1} parent=1 // pred_check
      _
    $region7: #{_forward_impl.1} parent=1 // pred_check_branch
      %12 = sbr.rel (0) target = $region9
    $region8: #{_forward_impl.1} parent=1 // pred_region
      _
    $region9: #{_forward_impl.1} parent=1 // pred_fallthru
      _
    // Predicated region
    $region10: #{_forward_impl.1} parent=1 // pred_check
      _
    $region11: #{_forward_impl.1} parent=1 // pred_check_branch
      %14 = sbr.rel (0) target = $region13
    $region12: #{_forward_impl.1} parent=1 // pred_region
      _
    $region13: #{_forward_impl.1} parent=1 // pred_fallthru
      _
    %v16 = vld [vmem:[%s0] sm:$0xf]
    %v17 = vld [vmem:[%s1] sm:$0xf]
    %v18 = vld [vmem:[%s1 + $0x4] sm:$0xf]
    %v19 = vld [vmem:[%s1 + $0x8] sm:$0xf]
    %v20 = vld [vmem:[%s1 + $0xc] sm:$0xf]
    %v21 = vld [vmem:[%s1 + $0x10] sm:$0xf]
    %v22 = vld [vmem:[%s1 + $0x14] sm:$0xf]
    %v23 = vld [vmem:[%s1 + $0x18] sm:$0xf]
    %v24 = vld [vmem:[%s1 + $0x1c] sm:$0xf]
    %v25 = vld [vmem:[%s1 + $0x20] sm:$0xf]
    %v26 = vld [vmem:[%s1 + $0x24] sm:$0xf]
    %v27 = vld [vmem:[%s1 + $0x28] sm:$0xf]
    %v28 = vld [vmem:[%s1 + $0x2c] sm:$0xf]
    %v29 = vld [vmem:[%s1 + $0x30] sm:$0xf]
    %v30 = vld [vmem:[%s1 + $0x34] sm:$0xf]
    %v31 = vld [vmem:[%s1 + $0x38] sm:$0xf]
    %v32 = vld [vmem:[%s1 + $0x3c] sm:$0xf]
    %v33 = vld [vmem:[%s2] sm:$0x1]
    %v35 = vlaneseq
    %v36 = vshrl.u32 %v35, 7
    %v37 = vsub.s32 0, %v36
    %v38 = vrot.slane %v33, %v37
    %v56 = vunpack.c.l.b16 %v17
    %v57 = vunpack.c.l.b16 %v18
    %v58 = vunpack.c.l.b16 %v19
    %v59 = vunpack.c.l.b16 %v20
    %v60 = vunpack.c.l.b16 %v21
    %v61 = vunpack.c.l.b16 %v22
    %v62 = vunpack.c.l.b16 %v23
    %v63 = vunpack.c.l.b16 %v24
    %v64 = vunpack.c.l.b16 %v25
    %v65 = vunpack.c.l.b16 %v26
    %v66 = vunpack.c.l.b16 %v27
    %v67 = vunpack.c.l.b16 %v28
    %v68 = vunpack.c.l.b16 %v29
    %v69 = vunpack.c.l.b16 %v30
    %v70 = vunpack.c.l.b16 %v31
    %v71 = vunpack.c.l.b16 %v32
    %v72 = vpack.c.b16 %v57, %v56
    %v73 = vpack.c.b16 %v59, %v58
    %v74 = vpack.c.b16 %v61, %v60
    %v75 = vpack.c.b16 %v63, %v62
    %v76 = vpack.c.b16 %v65, %v64
    %v77 = vpack.c.b16 %v67, %v66
    %v78 = vpack.c.b16 %v69, %v68
    %v79 = vpack.c.b16 %v71, %v70
    %88 = vmatprep.subr.bf16.mxu0 0
    %89 = vmatpush1.bf16.msra.mxu0 %v72
    %90 = vmatprep.subr.bf16.mxu0 0
    %91 = vmatpush1.bf16.msra.mxu0 %v73
    %92 = vmatprep.subr.bf16.mxu0 0
    %93 = vmatpush1.bf16.msra.mxu0 %v74
    %94 = vmatprep.subr.bf16.mxu0 0
    %95 = vmatpush1.bf16.msra.mxu0 %v75
    %96 = vmatprep.subr.bf16.mxu0 0
    %97 = vmatpush1.bf16.msra.mxu0 %v76
    %98 = vmatprep.subr.bf16.mxu0 0
    %99 = vmatpush1.bf16.msra.mxu0 %v77
    %100 = vmatprep.subr.bf16.mxu0 0
    %101 = vmatpush1.bf16.msra.mxu0 %v78
    %102 = vmatprep.subr.bf16.mxu0 0
    %103 = vmatpush1.bf16.msra.mxu0 %v79
    %104 = vmatprep.subr.bf16.mxu0 0
    %105 = vmatpush1.bf16.msra.mxu0 0
    %106 = vmatprep.subr.bf16.mxu0 0
    %107 = vmatpush1.bf16.msra.mxu0 0
    %108 = vmatprep.subr.bf16.mxu0 0
    %109 = vmatpush1.bf16.msra.mxu0 0
    %110 = vmatprep.subr.bf16.mxu0 0
    %111 = vmatpush1.bf16.msra.mxu0 0
    %112 = vmatprep.subr.bf16.mxu0 0
    %113 = vmatpush1.bf16.msra.mxu0 0
    %114 = vmatprep.subr.bf16.mxu0 0
    %115 = vmatpush1.bf16.msra.mxu0 0
    %116 = vmatprep.subr.bf16.mxu0 0
    %117 = vmatpush1.bf16.msra.mxu0 0
    %118 = vmatprep.subr.bf16.mxu0 0
    %119 = vmatpush1.bf16.msra.mxu0 0
    %120 = vmatprep.mubr.bf16.mxu0 0
    %121 = vmatmul.mubr.bf16.gmra.mrb[0].mxu0 %v16
    %v122 = vpop.f32.mrb[0].mxu0
    %v123 = vadd.f32 %v38, %v122
    %v124 = vpop.f32.mrb[0].mxu0
    %v125 = vpop.f32.mrb[0].mxu0
    %v126 = vpop.f32.mrb[0].mxu0
    %127 = vdwg.mxu0
    %128 = vst [vmem:[#allocation2] sm:$0xff] %v123
    // Predicated region
    $region14: #{_forward_impl.1} parent=1 // pred_check
      _
    $region15: #{_forward_impl.1} parent=1 // pred_check_branch
      %130 = sbr.rel (0) target = $region17
    $region16: #{_forward_impl.1} parent=1 // pred_region
      %s132 = ssub.s32 128, 128
      %133 = vsyncadd [#allocation3], %s132
      %s135 = sshll.u32 [#allocation2], 4
      %s136 = int_to_ptr.vmem [resolvable:$true] %s135
      %138 = dma.vmem_to_hbm [thread:$0]  %s136, 128, %s3, [#allocation3]
    $region17: #{_forward_impl.1} parent=1 // pred_fallthru
      _
    // Predicated region
    $region18: #{_forward_impl.1} parent=1 // pred_check
      _
    $region19: #{_forward_impl.1} parent=1 // pred_check_branch
      %140 = sbr.rel (0) target = $region21
    $region20: #{_forward_impl.1} parent=1 // pred_region
      %141 = dma.done [#allocation3], 128
    $region21: #{_forward_impl.1} parent=1 // pred_fallthru
      _
    %142 = vsyncpa [#allocation3], 1

// kernel: _forward_impl.1
$region0: #{_forward_impl.1}
  #allocation0 [shape = 'u32[]', space=smem, size = 0x4, offset = 0x4, fixed_abs, tag = 'smem constant byte address 0x4 - core index']
  #allocation1 [shape = 'u32[144,128]{1,0:T(1,128)}', space=vmem, size = 0x12000, scoped, tag = 'internal scratch']
  %s0 = inlined_call_operand.vmem [shape: bf16[8,128], index: 0, kind: input, shape index: {}]
  %s1 = inlined_call_operand.vmem [shape: bf16[128,128], index: 1, kind: input, shape index: {}]
  %s2 = inlined_call_operand.vmem [shape: f32[1,128], index: 2, kind: input, shape index: {}]
  %s3 = inlined_call_operand.hbm [shape: f32[8,128], index: 3, kind: output, shape index: {}]
  %s4 = sld [smem:[#allocation0]]
  $region22: #{_forward_impl.1} parent=0
    _
  %s6 = ssub.s32 1, %s4
  %s7 = scalar_select 0, %s6, %s4
  $region1: #{_forward_impl.1} parent=0
    #allocation2 [shape = 'u8[4096]{0}', space=vmem, size = 0x1000, scoped, tag = 'output window, operand 0, single buffered']
    #allocation3 [shape = 's32[1]{0}', space=sflag, size = 0x4, scoped, tag = 'scoped memory for _forward_impl.1']
    %8 = vsyncpa [#allocation3], 0
    // Predicated region
    $region2: #{_forward_impl.1} parent=1 // pred_check
      _
    $region3: #{_forward_impl.1} parent=1 // pred_check_branch
      %10 = sbr.rel (0) target = $region5
    $region4: #{_forward_impl.1} parent=1 // pred_region
      _
    $region5: #{_forward_impl.1} parent=1 // pred_fallthru
      _
    // Predicated region
    $region6: #{_forward_impl.1} parent=1 // pred_check
      _
    $region7: #{_forward_impl.1} parent=1 // pred_check_branch
      %12 = sbr.rel (0) target = $region9
    $region8: #{_forward_impl.1} parent=1 // pred_region
      _
    $region9: #{_forward_impl.1} parent=1 // pred_fallthru
      _
    // Predicated region
    $region10: #{_forward_impl.1} parent=1 // pred_check
      _
    $region11: #{_forward_impl.1} parent=1 // pred_check_branch
      %14 = sbr.rel (0) target = $region13
    $region12: #{_forward_impl.1} parent=1 // pred_region
      _
    $region13: #{_forward_impl.1} parent=1 // pred_fallthru
      _
    %v16 = vld [vmem:[%s0] sm:$0xf]
    %v17 = vld [vmem:[%s1] sm:$0xf]
    %v18 = vld [vmem:[%s1 + $0x4] sm:$0xf]
    %v19 = vld [vmem:[%s1 + $0x8] sm:$0xf]
    %v20 = vld [vmem:[%s1 + $0xc] sm:$0xf]
    %v21 = vld [vmem:[%s1 + $0x10] sm:$0xf]
    %v22 = vld [vmem:[%s1 + $0x14] sm:$0xf]
    %v23 = vld [vmem:[%s1 + $0x18] sm:$0xf]
    %v24 = vld [vmem:[%s1 + $0x1c] sm:$0xf]
    %v25 = vld [vmem:[%s1 + $0x20] sm:$0xf]
    %v26 = vld [vmem:[%s1 + $0x24] sm:$0xf]
    %v27 = vld [vmem:[%s1 + $0x28] sm:$0xf]
    %v28 = vld [vmem:[%s1 + $0x2c] sm:$0xf]
    %v29 = vld [vmem:[%s1 + $0x30] sm:$0xf]
    %v30 = vld [vmem:[%s1 + $0x34] sm:$0xf]
    %v31 = vld [vmem:[%s1 + $0x38] sm:$0xf]
    %v32 = vld [vmem:[%s1 + $0x3c] sm:$0xf]
    %v33 = vld [vmem:[%s2] sm:$0x1]
    %v35 = vlaneseq
    %v36 = vshrl.u32 %v35, 7
    %v37 = vsub.s32 0, %v36
    %v38 = vrot.slane %v33, %v37
    %v56 = vunpack.c.l.b16 %v17
    %v57 = vunpack.c.l.b16 %v18
    %v58 = vunpack.c.l.b16 %v19
    %v59 = vunpack.c.l.b16 %v20
    %v60 = vunpack.c.l.b16 %v21
    %v61 = vunpack.c.l.b16 %v22
    %v62 = vunpack.c.l.b16 %v23
    %v63 = vunpack.c.l.b16 %v24
    %v64 = vunpack.c.l.b16 %v25
    %v65 = vunpack.c.l.b16 %v26
    %v66 = vunpack.c.l.b16 %v27
    %v67 = vunpack.c.l.b16 %v28
    %v68 = vunpack.c.l.b16 %v29
    %v69 = vunpack.c.l.b16 %v30
    %v70 = vunpack.c.l.b16 %v31
    %v71 = vunpack.c.l.b16 %v32
    %v72 = vpack.c.b16 %v57, %v56
    %v73 = vpack.c.b16 %v59, %v58
    %v74 = vpack.c.b16 %v61, %v60
    %v75 = vpack.c.b16 %v63, %v62
    %v76 = vpack.c.b16 %v65, %v64
    %v77 = vpack.c.b16 %v67, %v66
    %v78 = vpack.c.b16 %v69, %v68
    %v79 = vpack.c.b16 %v71, %v70
    %88 = vmatprep.subr.bf16.mxu0 0
    %89 = vmatpush1.bf16.msra.mxu0 %v72
    %90 = vmatprep.subr.bf16.mxu0 0
    %91 = vmatpush1.bf16.msra.mxu0 %v73
    %92 = vmatprep.subr.bf16.mxu0 0
    %93 = vmatpush1.bf16.msra.mxu0 %v74
    %94 = vmatprep.subr.bf16.mxu0 0
    %95 = vmatpush1.bf16.msra.mxu0 %v75
    %96 = vmatprep.subr.bf16.mxu0 0
    %97 = vmatpush1.bf16.msra.mxu0 %v76
    %98 = vmatprep.subr.bf16.mxu0 0
    %99 = vmatpush1.bf16.msra.mxu0 %v77
    %100 = vmatprep.subr.bf16.mxu0 0
    %101 = vmatpush1.bf16.msra.mxu0 %v78
    %102 = vmatprep.subr.bf16.mxu0 0
    %103 = vmatpush1.bf16.msra.mxu0 %v79
    %104 = vmatprep.subr.bf16.mxu0 0
    %105 = vmatpush1.bf16.msra.mxu0 0
    %106 = vmatprep.subr.bf16.mxu0 0
    %107 = vmatpush1.bf16.msra.mxu0 0
    %108 = vmatprep.subr.bf16.mxu0 0
    %109 = vmatpush1.bf16.msra.mxu0 0
    %110 = vmatprep.subr.bf16.mxu0 0
    %111 = vmatpush1.bf16.msra.mxu0 0
    %112 = vmatprep.subr.bf16.mxu0 0
    %113 = vmatpush1.bf16.msra.mxu0 0
    %114 = vmatprep.subr.bf16.mxu0 0
    %115 = vmatpush1.bf16.msra.mxu0 0
    %116 = vmatprep.subr.bf16.mxu0 0
    %117 = vmatpush1.bf16.msra.mxu0 0
    %118 = vmatprep.subr.bf16.mxu0 0
    %119 = vmatpush1.bf16.msra.mxu0 0
    %120 = vmatprep.mubr.bf16.mxu0 0
    %121 = vmatmul.mubr.bf16.gmra.mrb[0].mxu0 %v16
    %v122 = vpop.f32.mrb[0].mxu0
    %v123 = vadd.f32 %v38, %v122
    %v124 = vpop.f32.mrb[0].mxu0
    %v125 = vpop.f32.mrb[0].mxu0
    %v126 = vpop.f32.mrb[0].mxu0
    %127 = vdwg.mxu0
    %128 = vst [vmem:[#allocation2] sm:$0xff] %v123
    // Predicated region
    $region14: #{_forward_impl.1} parent=1 // pred_check
      _
    $region15: #{_forward_impl.1} parent=1 // pred_check_branch
      %130 = sbr.rel (0) target = $region17
    $region16: #{_forward_impl.1} parent=1 // pred_region
      %s132 = ssub.s32 128, 128
      %133 = vsyncadd [#allocation3], %s132
      %s135 = sshll.u32 [#allocation2], 4
      %s136 = int_to_ptr.vmem [resolvable:$true] %s135
      %138 = dma.vmem_to_hbm [thread:$0]  %s136, 128, %s3, [#allocation3]
    $region17: #{_forward_impl.1} parent=1 // pred_fallthru
      _
    // Predicated region
    $region18: #{_forward_impl.1} parent=1 // pred_check
      _
    $region19: #{_forward_impl.1} parent=1 // pred_check_branch
      %140 = sbr.rel (0) target = $region21
    $region20: #{_forward_impl.1} parent=1 // pred_region
      %141 = dma.done [#allocation3], 128
    $region21: #{_forward_impl.1} parent=1 // pred_fallthru
      _
    %142 = vsyncpa [#allocation3], 1

</llo_original>
